<compile_context>
chip_gen: v7x
topology: tpu7x:2x2x1
jax: 0.10.0
libtpu: 0.0.40
codegen_flags: <defaults>
</compile_context>

<pallas_src>
import math
import functools

import jax
import jax.numpy as jnp
from jax import lax
from jax.experimental import pallas as pl
from jax.experimental.pallas import tpu as pltpu


def _round_up(x, m):
    return ((x + m - 1) // m) * m


def _cdiv(a, b):
    return (a + b - 1) // b


def _pick_tile(dim, max_tile, granule):
    """Pad-minimizing tile: the whole dim if it fits in one tile (a full-dim
    block is always legal), otherwise the smallest granule-multiple that keeps
    the same number of grid steps as max_tile would."""
    if dim <= max_tile:
        return dim
    steps = _cdiv(dim, max_tile)
    return min(_round_up(_cdiv(dim, steps), granule), _round_up(max_tile, granule))


# ----------------------------- kernels -----------------------------

def _linear_kernel_single_k(x_ref, w_ref, b_ref, o_ref, *, std_init, use_sin):
    """One (tile_m, tile_n) output tile with the full K dim VMEM-resident.

    No accumulator scratch: matmul -> affine -> (sin) -> store.
    x @ W.T without ever materializing a transpose: contract the last dims
    (the MXU consumes the transposed RHS natively).
    """
    out = lax.dot_general(
        x_ref[...], w_ref[...],
        dimension_numbers=(((1,), (1,)), ((), ())),
        preferred_element_type=jnp.float32,
    )
    out = std_init * out + b_ref[...]          # f32 epilogue on all chips
    if use_sin:
        out = jnp.sin(out)
    o_ref[...] = out.astype(o_ref.dtype)


def _linear_kernel_multi_k(x_ref, w_ref, b_ref, o_ref, acc_ref, *, std_init, use_sin):
    """Fallback for large in_dim: accumulate over the K grid axis in f32 VMEM."""
    k = pl.program_id(2)

    @pl.when(k == 0)
    def _():
        acc_ref[...] = jnp.zeros_like(acc_ref)

    acc_ref[...] += lax.dot_general(
        x_ref[...], w_ref[...],
        dimension_numbers=(((1,), (1,)), ((), ())),
        preferred_element_type=jnp.float32,
    )

    @pl.when(k == pl.num_programs(2) - 1)
    def _():
        out = std_init * acc_ref[...] + b_ref[...]
        if use_sin:
            out = jnp.sin(out)
        o_ref[...] = out.astype(o_ref.dtype)


# ----------------------------- wrapper -----------------------------

def linear_layer_pallas(x, weight, bias, *, std_init=1.0, bias_init=0.0,
                        act=False, tile_m=512, tile_n=512, tile_k=1024,
                        compute_dtype=None, collapse_nk=None):
    """x: (M, in_dim); weight: (out_dim, in_dim); bias: (out_dim,).

    compute_dtype: optionally jnp.bfloat16 for the matmul operands (MXU-native
    on all generations; accumulation and epilogue stay f32).
    collapse_nk: None = auto (collapse N/K grid axes whenever the weight panel
    fits VMEM); False forces the tiled fallback path (mainly for testing).
    """
    M, K = x.shape
    N, K2 = weight.shape
    assert K == K2 and bias.shape == (N,)
    out_dtype = x.dtype

    if compute_dtype is not None:
        x = x.astype(compute_dtype)
        weight = weight.astype(compute_dtype)
    in_itemsize = jnp.dtype(x.dtype).itemsize
    out_itemsize = jnp.dtype(out_dtype).itemsize
    sublane = max(8, 32 // in_itemsize)          # 8 for f32, 16 for bf16, 32 for int8

    # ---- generation-aware VMEM budget (v7x: 64 MiB/core; v5e/v6e: 128 MiB) ----
    try:
        vmem_cap = int(pltpu.get_tpu_info().vmem_capacity_bytes)
    except Exception:
        vmem_cap = 64 << 20                      # conservative fallback (v7x size)
    tile_budget = int(0.60 * vmem_cap)           # sizing budget, leaves compiler headroom

    def footprint(tm, tn, tk, with_acc):
        return (2 * (tm * tk + tn * tk) * in_itemsize     # double-buffered x / W tiles
                + 2 * tn * 4                              # fused bias
                + 2 * tm * tn * out_itemsize              # double-buffered output tile
                + (tm * tn * 4 if with_acc else 0))       # f32 accumulator

    # ---- M tiling: sublane-aligned, ragged last block, no wrapper pad ----
    tile_m = _pick_tile(M, max(tile_m, sublane), sublane)

    # ---- weight-resident fast path: collapse the N and K grid axes ----
    fits = footprint(tile_m, N, K, with_acc=False) <= tile_budget
    if not fits and tile_m > 256:
        tm_small = _pick_tile(M, 256, sublane)   # a smaller M tile may still fit
        if footprint(tm_small, N, K, with_acc=False) <= tile_budget:
            tile_m, fits = tm_small, True
    collapse = fits if collapse_nk is None else (bool(collapse_nk) and fits)

    if collapse:
        tile_n, tile_k = N, K
        k_steps = 1
    else:
        # N: lane-dense (multiples of 128), pad-minimizing, ragged last block.
        tile_n = _pick_tile(N, tile_n, 128)
        # K: the contraction axis must be exactly covered -> zero-pad if split.
        if K <= tile_k:
            tile_k = K
        else:
            tile_k = _round_up(tile_k, 128)
        # Shrink tiles until the double-buffered footprint fits the budget.
        while footprint(tile_m, tile_n, tile_k, True) > tile_budget and tile_k > 512:
            tile_k = _round_up(tile_k // 2, 128)
        while footprint(tile_m, tile_n, tile_k, True) > tile_budget and tile_n > 256:
            tile_n = _round_up(tile_n // 2, 128)
        while footprint(tile_m, tile_n, tile_k, True) > tile_budget and tile_m > sublane:
            tile_m = _round_up(tile_m // 2, sublane)
        k_steps = _cdiv(K, tile_k)
        K_pad = k_steps * tile_k
        if K_pad != K:
            # K padding must be explicit zeros: garbage along the contraction
            # axis would corrupt valid outputs.  (M/N raggedness is inert: the
            # affected output rows/cols are dropped by masked stores.)
            x = jnp.pad(x, ((0, 0), (0, K_pad - K)))
            weight = jnp.pad(weight, ((0, 0), (0, K_pad - K)))

    m_steps = _cdiv(M, tile_m)
    n_steps = _cdiv(N, tile_n)

    # ---- v7x megacore: make sure there are >=2 parallel blocks when worthwhile ----
    if m_steps * n_steps == 1 and tile_m >= 128:
        tile_m = _round_up(_cdiv(tile_m, 2), sublane)
        m_steps = _cdiv(M, tile_m)

    # Fold the affine into the bias once: std*(xW^T + b) + b0 = std*(xW^T) + (std*b + b0)
    fused_bias = (float(std_init) * bias.astype(jnp.float32)
                  + float(bias_init)).reshape(1, N)

    grid = (m_steps, n_steps, k_steps)
    multi_k = k_steps > 1
    kernel = functools.partial(
        _linear_kernel_multi_k if multi_k else _linear_kernel_single_k,
        std_init=float(std_init), use_sin=bool(act))
    scratch = [pltpu.VMEM((tile_m, tile_n), jnp.float32)] if multi_k else []

    fp = footprint(tile_m, tile_n, tile_k, multi_k)
    vmem_limit = int(min(int(0.85 * vmem_cap), max(2 * fp, 32 << 20)))

    cost = pl.CostEstimate(
        flops=int(2 * M * N * K),
        transcendentals=int(M * N) if act else 0,
        bytes_accessed=int((M * K + N * K) * in_itemsize + M * N * out_itemsize),
    )

    out = pl.pallas_call(
        kernel,
        out_shape=jax.ShapeDtypeStruct((M, N), out_dtype),
        grid_spec=pltpu.PrefetchScalarGridSpec(
            num_scalar_prefetch=0,
            grid=grid,
            in_specs=[
                pl.BlockSpec((tile_m, tile_k), lambda i, j, k: (i, k)),   # x tile
                pl.BlockSpec((tile_n, tile_k), lambda i, j, k: (j, k)),   # W tile (out,in)
                pl.BlockSpec((1, tile_n), lambda i, j, k: (0, j)),        # fused bias
            ],
            out_specs=pl.BlockSpec((tile_m, tile_n), lambda i, j, k: (i, j)),
            scratch_shapes=scratch,
        ),
        compiler_params=pltpu.CompilerParams(
            dimension_semantics=("parallel", "parallel", "arbitrary"),
            vmem_limit_bytes=vmem_limit,
        ),
        cost_estimate=cost,
    )(x, weight, fused_bias)

    return out


def init_linear_params(key, in_dim, out_dim, *, is_first=False, freq_init=False):
    """Deterministic re-implementation of the PyTorch __init__ distributions."""
    kw, kb = jax.random.split(key)
    if is_first:
        w = jax.random.uniform(kw, (out_dim, in_dim),
                               minval=-1.0 / in_dim, maxval=1.0 / in_dim)
    elif freq_init:
        lim = math.sqrt(6.0 / in_dim) / 25.0
        w = jax.random.uniform(kw, (out_dim, in_dim), minval=-lim, maxval=lim)
    else:
        # 0.25 * kaiming_normal_(a=0.2, mode='fan_in', nonlinearity='leaky_relu')
        a = 0.2
        gain = math.sqrt(2.0 / (1.0 + a * a))
        std = gain / math.sqrt(in_dim)
        w = 0.25 * std * jax.random.normal(kw, (out_dim, in_dim))
    blim = math.sqrt(1.0 / in_dim)
    b = jax.random.uniform(kb, (out_dim,), minval=-blim, maxval=blim)
    return w.astype(jnp.float32), b.astype(jnp.float32)


if __name__ == "__main__":
    key = jax.random.PRNGKey(0)
    k_x, k_p, k_x2, k_p2 = jax.random.split(key, 4)

    std_init, bias_init, act = 2.0, 0.5, True   # exercise full affine + sin path

    # --- 1. small config consistent with the module (MLP hidden layer) ---
    batch, in_dim, out_dim = 16, 32, 64
    x = jax.random.normal(k_x, (batch, in_dim), dtype=jnp.float32)
    weight, bias = init_linear_params(k_p, in_dim, out_dim)
    out = linear_layer_pallas(x, weight, bias,
                              std_init=std_init, bias_init=bias_init, act=act)
    out = jax.block_until_ready(out)
    ref = jnp.sin(std_init * (x @ weight.T + bias) + bias_init)
    assert out.shape == (batch, out_dim)
    assert jnp.allclose(out, ref, atol=1e-4, rtol=1e-4)

    # --- 2. ragged shapes: weight-resident (collapsed N/K) path + megacore M split ---
    batch2, in_dim2, out_dim2 = 300, 384, 320
    x2 = jax.random.normal(k_x2, (batch2, in_dim2), dtype=jnp.float32)
    w2, b2 = init_linear_params(k_p2, in_dim2, out_dim2)
    ref2 = jnp.sin(std_init * (x2 @ w2.T + b2) + bias_init)
    out2 = jax.block_until_ready(
        linear_layer_pallas(x2, w2, b2, std_init=std_init,
                            bias_init=bias_init, act=act))
    assert out2.shape == (batch2, out_dim2)
    assert jnp.allclose(out2, ref2, atol=5e-3, rtol=5e-3)

    # --- 3. fallback path: tiled M/N/K with f32 accumulator (K zero-padded 384->512) ---
    out3 = jax.block_until_ready(
        linear_layer_pallas(x2, w2, b2, std_init=std_init,
                            bias_init=bias_init, act=act,
                            tile_m=256, tile_n=256, tile_k=256,
                            collapse_nk=False))
    assert jnp.allclose(out3, ref2, atol=5e-3, rtol=5e-3)

    # --- 4. bf16 matmul operands (f32 accumulate/epilogue), relaxed tolerance ---
    out4 = jax.block_until_ready(
        linear_layer_pallas(x2, w2, b2, std_init=std_init,
                            bias_init=bias_init, act=act,
                            compute_dtype=jnp.bfloat16))
    assert jnp.allclose(out4, ref2, atol=5e-2, rtol=5e-2)

    print("KERNEL_OK")
</pallas_src>

<mosaic_0001>
module attributes {stable_mosaic.version = 11 : i64} {
  func.func @_linear_kernel_single_k(%arg0: i32, %arg1: i32, %arg2: i32, %arg3: memref<16x32xf32, #tpu.memory_space<vmem>>, %arg4: memref<64x32xf32, #tpu.memory_space<vmem>>, %arg5: memref<1x64xf32, #tpu.memory_space<vmem>>, %arg6: memref<16x64xf32, #tpu.memory_space<vmem>>) attributes {dimension_semantics = [#tpu.dimension_semantics<parallel>, #tpu.dimension_semantics<parallel>, #tpu.dimension_semantics<arbitrary>], iteration_bounds = array<i64: 1, 1, 1>, scalar_prefetch = 0 : i64, scratch_operands = 0 : i64, tpu.core_type = #tpu.core_type<tc>, window_params = [{transform_indices = @transform_0, window_bounds = array<i64: 16, 32>}, {transform_indices = @transform_1, window_bounds = array<i64: 64, 32>}, {transform_indices = @transform_2, window_bounds = array<i64: 1, 64>}, {transform_indices = @transform_3, window_bounds = array<i64: 16, 64>}]} {
    %c0 = arith.constant 0 : index
    %c0_0 = arith.constant 0 : index
    %0 = vector.load %arg3[%c0, %c0_0] : memref<16x32xf32, #tpu.memory_space<vmem>>, vector<16x32xf32>
    %c0_1 = arith.constant 0 : index
    %c0_2 = arith.constant 0 : index
    %1 = vector.load %arg4[%c0_1, %c0_2] : memref<64x32xf32, #tpu.memory_space<vmem>>, vector<64x32xf32>
    %cst = arith.constant dense<0.000000e+00> : vector<16x64xf32>
    %2 = tpu.matmul %0, %1, %cst {dimension_numbers = #tpu.dot_dimension_numbers<[1], [1], [0], [0], [0, 0, 1, 0], [], []>} : vector<16x32xf32>, vector<64x32xf32>, vector<16x64xf32> -> vector<16x64xf32>
    %cst_3 = arith.constant 2.000000e+00 : f32
    %3 = vector.broadcast %cst_3 : f32 to vector<16x64xf32>
    %4 = arith.mulf %3, %2 : vector<16x64xf32>
    %c0_4 = arith.constant 0 : index
    %c0_5 = arith.constant 0 : index
    %5 = vector.load %arg5[%c0_4, %c0_5] : memref<1x64xf32, #tpu.memory_space<vmem>>, vector<1x64xf32>
    %6 = vector.broadcast %5 : vector<1x64xf32> to vector<16x64xf32>
    %7 = arith.addf %4, %6 : vector<16x64xf32>
    %8 = math.sin %7 : vector<16x64xf32>
    %c0_6 = arith.constant 0 : index
    %c0_7 = arith.constant 0 : index
    %9 = vector.load %arg6[%c0_6, %c0_7] : memref<16x64xf32, #tpu.memory_space<vmem>>, vector<16x64xf32>
    tpu.vector_store %arg6[%c0_6, %c0_7], %8 {strides = array<i32>} : memref<16x64xf32, #tpu.memory_space<vmem>>, vector<16x64xf32>,
    return
  }
  func.func @transform_0(%arg0: i32, %arg1: i32, %arg2: i32) -> (i32, i32) {
    %c0_i32 = arith.constant 0 : i32
    return %arg0, %arg2 : i32, i32
  }
  func.func @transform_1(%arg0: i32, %arg1: i32, %arg2: i32) -> (i32, i32) {
    %c0_i32 = arith.constant 0 : i32
    return %arg1, %arg2 : i32, i32
  }
  func.func @transform_2(%arg0: i32, %arg1: i32, %arg2: i32) -> (i32, i32) {
    %c0_i32 = arith.constant 0 : i32
    %c0_i32_0 = arith.constant 0 : i32
    return %c0_i32, %arg1 : i32, i32
  }
  func.func @transform_3(%arg0: i32, %arg1: i32, %arg2: i32) -> (i32, i32) {
    %c0_i32 = arith.constant 0 : i32
    return %arg0, %arg1 : i32, i32
  }
}

</mosaic_0001>

<llo_original>
// kernel: tpu_custom_call.1
$region0: #{tpu_custom_call.1}
  #allocation0 [shape = 'u32[]', space=smem, size = 0x4, offset = 0x4, fixed_abs, tag = 'smem constant byte address 0x4 - core index']
  #allocation1 [shape = 'u32[144,128]{1,0:T(1,128)}', space=vmem, size = 0x12000, scoped, tag = 'internal scratch']
  %s0 = inlined_call_operand.vmem [shape: f32[16,32], index: 0, kind: input, shape index: {}]
  %s1 = inlined_call_operand.vmem [shape: f32[64,32], index: 1, kind: input, shape index: {}]
  %s2 = inlined_call_operand.vmem [shape: f32[1,64], index: 2, kind: input, shape index: {}]
  %s3 = inlined_call_operand.hbm [shape: f32[16,64], index: 3, kind: output, shape index: {}]
  %s4 = sld [smem:[#allocation0]]
  $region22: #{tpu_custom_call.1} parent=0
    _
  %s6 = ssub.s32 1, %s4
  %s7 = scalar_select 0, %s6, %s4
  $region1: #{tpu_custom_call.1} parent=0
    #allocation2 [shape = 'u8[8192]{0}', space=vmem, size = 0x2000, scoped, tag = 'output window, operand 0, single buffered']
    #allocation3 [shape = 's32[1]{0}', space=sflag, size = 0x4, scoped, tag = 'scoped memory for tpu_custom_call.1']
    %8 = vsyncpa [#allocation3], 0
    // Predicated region
    $region2: #{tpu_custom_call.1} parent=1 // pred_check
      _
    $region3: #{tpu_custom_call.1} parent=1 // pred_check_branch
      %10 = sbr.rel (0) target = $region5
    $region4: #{tpu_custom_call.1} parent=1 // pred_region
      _
    $region5: #{tpu_custom_call.1} parent=1 // pred_fallthru
      _
    // Predicated region
    $region6: #{tpu_custom_call.1} parent=1 // pred_check
      _
    $region7: #{tpu_custom_call.1} parent=1 // pred_check_branch
      %12 = sbr.rel (0) target = $region9
    $region8: #{tpu_custom_call.1} parent=1 // pred_region
      _
    $region9: #{tpu_custom_call.1} parent=1 // pred_fallthru
      _
    // Predicated region
    $region10: #{tpu_custom_call.1} parent=1 // pred_check
      _
    $region11: #{tpu_custom_call.1} parent=1 // pred_check_branch
      %14 = sbr.rel (0) target = $region13
    $region12: #{tpu_custom_call.1} parent=1 // pred_region
      _
    $region13: #{tpu_custom_call.1} parent=1 // pred_fallthru
      _
    %v15 = vld [vmem:[%s0] sm:$0xff]
    %v16 = vld [vmem:[%s0 + $0x8] sm:$0xff]
    %v17 = vld [vmem:[%s1] sm:$0xff]
    %v18 = vld [vmem:[%s1 + $0x8] sm:$0xff]
    %v19 = vld [vmem:[%s1 + $0x10] sm:$0xff]
    %v20 = vld [vmem:[%s1 + $0x18] sm:$0xff]
    %v21 = vld [vmem:[%s1 + $0x20] sm:$0xff]
    %v22 = vld [vmem:[%s1 + $0x28] sm:$0xff]
    %v23 = vld [vmem:[%s1 + $0x30] sm:$0xff]
    %v24 = vld [vmem:[%s1 + $0x38] sm:$0xff]
    %vm25 = vcmask 261120
    %v27 = vsel %vm25, %v15, 0
    %v30 = vsel %vm25, %v16, 0
    %v33 = vsel %vm25, %v17, 0
    %v36 = vsel %vm25, %v18, 0
    %v39 = vsel %vm25, %v19, 0
    %v42 = vsel %vm25, %v20, 0
    %v45 = vsel %vm25, %v21, 0
    %v48 = vsel %vm25, %v22, 0
    %v51 = vsel %vm25, %v23, 0
    %v54 = vsel %vm25, %v24, 0
    %56 = vmatprep.subr.mxu0 0.0
    %57 = vmatpush1.xpose.msra.mxu0 %v33
    %58 = vmatprep.subr.mxu0 0.0
    %59 = vmatpush1.xpose.msra.mxu0 %v36
    %60 = vmatprep.subr.mxu0 0.0
    %61 = vmatpush1.xpose.msra.mxu0 %v39
    %62 = vmatprep.subr.mxu0 0.0
    %63 = vmatpush1.xpose.msra.mxu0 %v42
    %64 = vmatprep.subr.mxu0 0.0
    %65 = vmatpush1.xpose.msra.mxu0 %v45
    %66 = vmatprep.subr.mxu0 0.0
    %67 = vmatpush1.xpose.msra.mxu0 %v48
    %68 = vmatprep.subr.mxu0 0.0
    %69 = vmatpush1.xpose.msra.mxu0 %v51
    %70 = vmatprep.subr.mxu0 0.0
    %71 = vmatpush1.xpose.msra.mxu0 %v54
    %72 = vmatprep.subr.mxu0 0.0
    %73 = vmatpush1.xpose.msra.mxu0 0.0
    %74 = vmatprep.subr.mxu0 0.0
    %75 = vmatpush1.xpose.msra.mxu0 0.0
    %76 = vmatprep.subr.mxu0 0.0
    %77 = vmatpush1.xpose.msra.mxu0 0.0
    %78 = vmatprep.subr.mxu0 0.0
    %79 = vmatpush1.xpose.msra.mxu0 0.0
    %80 = vmatprep.subr.mxu0 0.0
    %81 = vmatpush1.xpose.msra.mxu0 0.0
    %82 = vmatprep.subr.mxu0 0.0
    %83 = vmatpush1.xpose.msra.mxu0 0.0
    %84 = vmatprep.subr.mxu0 0.0
    %85 = vmatpush1.xpose.msra.mxu0 0.0
    %86 = vmatprep.subr.mxu0 0.0
    %87 = vmatpush1.xpose.msra.mxu0 0.0
    %88 = vmatprep.subr.mxu0 0.0
    %89 = vmatpush1.xpose.msra.mxu0 0.0
    %90 = vmatprep.subr.mxu0 0.0
    %91 = vmatpush1.xpose.msra.mxu0 0.0
    %92 = vmatprep.subr.mxu0 0.0
    %93 = vmatpush1.xpose.msra.mxu0 0.0
    %94 = vmatprep.subr.mxu0 0.0
    %95 = vmatpush1.xpose.msra.mxu0 0.0
    %96 = vmatprep.subr.mxu0 0.0
    %97 = vmatpush1.xpose.msra.mxu0 0.0
    %98 = vmatprep.subr.mxu0 0.0
    %99 = vmatpush1.xpose.msra.mxu0 0.0
    %100 = vmatprep.subr.mxu0 0.0
    %101 = vmatpush1.xpose.msra.mxu0 0.0
    %102 = vmatprep.subr.mxu0 0.0
    %103 = vmatpush1.xpose.msra.mxu0 0.0
    %104 = vmatprep.subr.mxu0 0.0
    %105 = vmatpush1.xpose.msra.mxu0 0.0
    %106 = vmatprep.subr.mxu0 0.0
    %107 = vmatpush1.xpose.msra.mxu0 0.0
    %108 = vmatprep.subr.mxu0 0.0
    %109 = vmatpush1.xpose.msra.mxu0 0.0
    %110 = vmatprep.subr.mxu0 0.0
    %111 = vmatpush1.xpose.msra.mxu0 0.0
    %112 = vmatprep.subr.mxu0 0.0
    %113 = vmatpush1.xpose.msra.mxu0 0.0
    %114 = vmatprep.subr.mxu0 0.0
    %115 = vmatpush1.xpose.msra.mxu0 0.0
    %116 = vmatprep.subr.mxu0 0.0
    %117 = vmatpush1.xpose.msra.mxu0 0.0
    %118 = vmatprep.subr.mxu0 0.0
    %119 = vmatpush1.xpose.msra.mxu0 0.0
    %120 = vmatprep.mubr.f32.mxu0 0.0
    %121 = vmatmul.mubr.f32.gmra.mrb[0].mxu0 %v27
    %v122 = vpop.f32.mrb[0].mxu0
    %v123 = vadd.f32 0.0, %v122
    %v124 = vpop.f32.mrb[0].mxu0
    %125 = vmatprep.mubr.f32.mxu0 0.0
    %126 = vmatmul.mubr.f32.gmra.mrb[0].mxu0 %v30
    %v127 = vpop.f32.mrb[0].mxu0
    %v128 = vadd.f32 0.0, %v127
    %v129 = vpop.f32.mrb[0].mxu0
    %130 = vdwg.mxu0
    %v131 = vmul.f32 %v123, 2.0
    %v132 = vmul.f32 %v128, 2.0
    %v133 = vld [vmem:[%s2] sm:$0x1]
    %v135 = vlaneseq
    %v136 = vshrl.u32 %v135, 7
    %v137 = vsub.s32 0, %v136
    %v138 = vrot.slane %v133, %v137
    %v140 = vadd.f32 %v131, %v138
    %v141 = vadd.f32 %v132, %v138
    %v142 = vand.u32 2147483647, %v140
    %vm143 = vcmp.le.f32.partialorder %v142, 0.7853982
    %vm144 = vcmp.lt.s32.totalorder %v140, 0
    %v145 = vand.u32 %v140, 2139095040
    %v146 = vshrl.u32 %v145, 23
    %v147 = vsub.s32 %v146, 127
    %v148 = vand.u32 2147483647, %v140
    %v149 = vand.u32 %v148, 8388607
    %v150 = vor.u32 %v149, 8388608
    %v151 = vsub.s32 0, %v150
    %v152 = vadd.s32 %v147, 1
    %vm153 = vcmp.gt.s32.totalorder %v152, 0
    %v154 = vsel %vm153, %v152, 0
    %v155 = vshrl.u32 %v154, 5
    %v156 = vand.u32 %v154, 31
    %v157 = vsub.s32 32, %v156
    %v158 = vshrl.u32 683565275, %v157
    %v159 = vshll.u32 683565275, %v156
    %v160 = vshrl.u32 2475754826, %v157
    %v161 = vor.u32 %v159, %v160
    %v162 = vshll.u32 2475754826, %v156
    %v163 = vshrl.u32 2131351028, %v157
    %v164 = vor.u32 %v162, %v163
    %v165 = vshll.u32 2131351028, %v156
    %v166 = vshrl.u32 2102212464, %v157
    %v167 = vor.u32 %v165, %v166
    %v168 = vshll.u32 2102212464, %v156
    %v169 = vshrl.u32 920167782, %v157
    %v170 = vor.u32 %v168, %v169
    %v171 = vshll.u32 920167782, %v156
    %v172 = vshrl.u32 1326507024, %v157
    %v173 = vor.u32 %v171, %v172
    %vm174 = vcmp.lt.s32.totalorder %v155, 1
    %vm175 = vcmp.lt.s32.totalorder %v155, 2
    %vm176 = vcmp.lt.s32.totalorder %v155, 3
    %vm177 = vcmp.lt.s32.totalorder %v155, 4
    %v178 = vsel %vm174, %v158, %v161
    %v179 = vsel %vm177, %v167, 2102212464
    %v180 = vsel %vm176, %v164, %v179
    %v181 = vsel %vm175, %v178, %v180
    %v182 = vsel %vm174, %v161, %v164
    %v183 = vsel %vm177, %v170, 920167782
    %v184 = vsel %vm176, %v167, %v183
    %v185 = vsel %vm175, %v182, %v184
    %v186 = vsel %vm174, %v164, %v167
    %v187 = vsel %vm177, %v173, 1326507024
    %v188 = vsel %vm176, %v170, %v187
    %v189 = vsel %vm175, %v186, %v188
    %v190 = vshll.u32 %v150, 8
    %v191 = vmul.u32.u64.compose %v190, %v189
    %v192 = vextract.low.u32 %v191
    %v193 = vextract.high.u32 %v191
    %v194 = vmul.u32.u64.compose %v190, %v185
    %v195 = vextract.low.u32 %v194
    %v196 = vextract.high.u32 %v194
    %v197 = vmul.u32 %v190, %v181
    %v198 = vadd.s32 %v193, %v195
    %vm199 = vc.u32 %v193, %v195
    %v200 = vadd.s32 %v196, 1
    %v201 = vsel %vm199, %v200, %v196
    %v202 = vadd.s32 %v197, %v201
    %v203 = vadd.s32 %v202, 536870912
    %v204 = vshrl.u32 %v203, 30
    %v205 = vshll.u32 %v204, 30
    %v206 = vsub.s32 %v202, %v205
    %vm207 = vcmp.lt.s32.totalorder %v206, 0
    %v208 = vsub.s32 0, %v206
    %v209 = vsel %vm207, %v208, %v206
    %v210 = vclz %v209
    %v211 = vsub.s32 %v210, 2
    %vm212 = vcmp.gt.s32.totalorder 0, %v211
    %v213 = vsel %vm212, 0, %v211
    %v214 = vsub.s32 32, %v213
    %v215 = vshll.u32 %v206, %v213
    %v216 = vshrl.u32 %v198, %v214
    %v217 = vor.u32 %v215, %v216
    %v218 = vsub.s32 4294967266, %v213
    %v219 = vadd.s32 %v218, 127
    %v220 = vshll.u32 %v219, 23
    %v221 = vor.u32 4788187, %v220
    %v222 = vand.u32 2147483647, %v221
    %v224 = vcvt.s32.f32 %v217
    %v225 = vmul.f32 %v224, %v222
    %v226 = vxor.u32 %v225, 2147483648
    %v227 = vsel %vm144, %v226, %v225
    %v228 = vsub.s32 4, %v204
    %v229 = vsel %vm144, %v228, %v204
    %v230 = vsel %vm143, %v140, %v227
    %v231 = vsel %vm143, 0, %v229
    %v232 = vcosq.f32.pop %v230
    %v233 = vsinq.f32.pop %v230
    %vm234 = vweird.f32 %v140
    %v235 = vadd.s32 %v231, 3
    %v236 = vand.u32 %v235, 3
    %vm237 = vcmp.lt.s32.totalorder %v236, 2
    %vm238 = vcmp.eq.s32.totalorder %v236, 0
    %v239 = vxor.u32 %v233, 2147483648
    %v240 = vsel %vm238, %v232, %v239
    %vm241 = vcmp.eq.s32.totalorder %v236, 2
    %v242 = vxor.u32 %v232, 2147483648
    %v243 = vsel %vm241, %v242, %v233
    %v244 = vsel %vm237, %v240, %v243
    %v245 = vsel %vm234, nan, %v244
    %v246 = vand.u32 2147483647, %v141
    %vm247 = vcmp.le.f32.partialorder %v246, 0.7853982
    %vm248 = vcmp.lt.s32.totalorder %v141, 0
    %v249 = vand.u32 %v141, 2139095040
    %v250 = vshrl.u32 %v249, 23
    %v251 = vsub.s32 %v250, 127
    %v252 = vand.u32 2147483647, %v141
    %v253 = vand.u32 %v252, 8388607
    %v254 = vor.u32 %v253, 8388608
    %v255 = vsub.s32 0, %v254
    %v256 = vadd.s32 %v251, 1
    %vm257 = vcmp.gt.s32.totalorder %v256, 0
    %v258 = vsel %vm257, %v256, 0
    %v259 = vshrl.u32 %v258, 5
    %v260 = vand.u32 %v258, 31
    %v261 = vsub.s32 32, %v260
    %v262 = vshrl.u32 683565275, %v261
    %v263 = vshll.u32 683565275, %v260
    %v264 = vshrl.u32 2475754826, %v261
    %v265 = vor.u32 %v263, %v264
    %v266 = vshll.u32 2475754826, %v260
    %v267 = vshrl.u32 2131351028, %v261
    %v268 = vor.u32 %v266, %v267
    %v269 = vshll.u32 2131351028, %v260
    %v270 = vshrl.u32 2102212464, %v261
    %v271 = vor.u32 %v269, %v270
    %v272 = vshll.u32 2102212464, %v260
    %v273 = vshrl.u32 920167782, %v261
    %v274 = vor.u32 %v272, %v273
    %v275 = vshll.u32 920167782, %v260
    %v276 = vshrl.u32 1326507024, %v261
    %v277 = vor.u32 %v275, %v276
    %vm278 = vcmp.lt.s32.totalorder %v259, 1
    %vm279 = vcmp.lt.s32.totalorder %v259, 2
    %vm280 = vcmp.lt.s32.totalorder %v259, 3
    %vm281 = vcmp.lt.s32.totalorder %v259, 4
    %v282 = vsel %vm278, %v262, %v265
    %v283 = vsel %vm281, %v271, 2102212464
    %v284 = vsel %vm280, %v268, %v283
    %v285 = vsel %vm279, %v282, %v284
    %v286 = vsel %vm278, %v265, %v268
    %v287 = vsel %vm281, %v274, 920167782
    %v288 = vsel %vm280, %v271, %v287
    %v289 = vsel %vm279, %v286, %v288
    %v290 = vsel %vm278, %v268, %v271
    %v291 = vsel %vm281, %v277, 1326507024
    %v292 = vsel %vm280, %v274, %v291
    %v293 = vsel %vm279, %v290, %v292
    %v294 = vshll.u32 %v254, 8
    %v295 = vmul.u32.u64.compose %v294, %v293
    %v296 = vextract.low.u32 %v295
    %v297 = vextract.high.u32 %v295
    %v298 = vmul.u32.u64.compose %v294, %v289
    %v299 = vextract.low.u32 %v298
    %v300 = vextract.high.u32 %v298
    %v301 = vmul.u32 %v294, %v285
    %v302 = vadd.s32 %v297, %v299
    %vm303 = vc.u32 %v297, %v299
    %v304 = vadd.s32 %v300, 1
    %v305 = vsel %vm303, %v304, %v300
    %v306 = vadd.s32 %v301, %v305
    %v307 = vadd.s32 %v306, 536870912
    %v308 = vshrl.u32 %v307, 30
    %v309 = vshll.u32 %v308, 30
    %v310 = vsub.s32 %v306, %v309
    %vm311 = vcmp.lt.s32.totalorder %v310, 0
    %v312 = vsub.s32 0, %v310
    %v313 = vsel %vm311, %v312, %v310
    %v314 = vclz %v313
    %v315 = vsub.s32 %v314, 2
    %vm316 = vcmp.gt.s32.totalorder 0, %v315
    %v317 = vsel %vm316, 0, %v315
    %v318 = vsub.s32 32, %v317
    %v319 = vshll.u32 %v310, %v317
    %v320 = vshrl.u32 %v302, %v318
    %v321 = vor.u32 %v319, %v320
    %v322 = vsub.s32 4294967266, %v317
    %v323 = vadd.s32 %v322, 127
    %v324 = vshll.u32 %v323, 23
    %v325 = vor.u32 4788187, %v324
    %v326 = vand.u32 2147483647, %v325
    %v328 = vcvt.s32.f32 %v321
    %v329 = vmul.f32 %v328, %v326
    %v330 = vxor.u32 %v329, 2147483648
    %v331 = vsel %vm248, %v330, %v329
    %v332 = vsub.s32 4, %v308
    %v333 = vsel %vm248, %v332, %v308
    %v334 = vsel %vm247, %v141, %v331
    %v335 = vsel %vm247, 0, %v333
    %v336 = vcosq.f32.pop %v334
    %v337 = vsinq.f32.pop %v334
    %vm338 = vweird.f32 %v141
    %v339 = vadd.s32 %v335, 3
    %v340 = vand.u32 %v339, 3
    %vm341 = vcmp.lt.s32.totalorder %v340, 2
    %vm342 = vcmp.eq.s32.totalorder %v340, 0
    %v343 = vxor.u32 %v337, 2147483648
    %v344 = vsel %vm342, %v336, %v343
    %vm345 = vcmp.eq.s32.totalorder %v340, 2
    %v346 = vxor.u32 %v336, 2147483648
    %v347 = vsel %vm345, %v346, %v337
    %v348 = vsel %vm341, %v344, %v347
    %v349 = vsel %vm338, nan, %v348
    %vm350 = vcmask 523264
    %351 = vst.msk [vmem:[#allocation2] sm:$0xff] %vm350, %v245
    %352 = vst.msk [vmem:[#allocation2 + $0x8] sm:$0xff] %vm350, %v349
    // Predicated region
    $region14: #{tpu_custom_call.1} parent=1 // pred_check
      _
    $region15: #{tpu_custom_call.1} parent=1 // pred_check_branch
      %354 = sbr.rel (0) target = $region17
    $region16: #{tpu_custom_call.1} parent=1 // pred_region
      %s356 = ssub.s32 256, 256
      %357 = vsyncadd [#allocation3], %s356
      %s358 = sshll.u32 [#allocation2], 4
      %s359 = int_to_ptr.vmem [resolvable:$true] %s358
      %364 = dma.vmem_to_hbm [thread:$0]  %s359, 256, %s3, [#allocation3], 128, 128, 8
    $region17: #{tpu_custom_call.1} parent=1 // pred_fallthru
      _
    // Predicated region
    $region18: #{tpu_custom_call.1} parent=1 // pred_check
      _
    $region19: #{tpu_custom_call.1} parent=1 // pred_check_branch
      %366 = sbr.rel (0) target = $region21
    $region20: #{tpu_custom_call.1} parent=1 // pred_region
      %367 = dma.done [#allocation3], 256
    $region21: #{tpu_custom_call.1} parent=1 // pred_fallthru
      _
    %368 = vsyncpa [#allocation3], 1

</llo_original>
